<compile_context>
chip_gen: v6e
topology: v6e:2x2x1
jax: 0.10.0
libtpu: 0.0.40
codegen_flags: <defaults>
</compile_context>

<pallas_src>
import jax
import jax.numpy as jnp
from jax import lax
from jax.experimental import pallas as pl
from jax.experimental.pallas import tpu as pltpu

NUM_ADDED = 2


def _round_up(n, m):
    return ((n + m - 1) // m) * m


def _fused_kernel(x_ref, w1_ref, b1_ref, w2_ref, b2_ref, o_ref):
    """One batch tile: MLP + fused ego passthrough, single full-lane store.

    x_ref : (TM, D)         f32   full-width input block (ego cols included)
    w1_ref: (D, H_PAD)      f32/bf16  (rows [0, NUM_ADDED) are zero)
    b1_ref: (1, H_PAD)      f32
    w2_ref: (H_PAD, O_PAD)  f32/bf16  (real cols at [NUM_ADDED, NUM_ADDED+enc_out))
    b2_ref: (1, O_PAD)      f32       (shifted the same way)
    o_ref : (TM, O_PAD)     f32   lane-dense, multiple of 128
    """
    x = x_ref[...]                               # f32, used for exact passthrough
    w1 = w1_ref[...]
    h = jnp.dot(x.astype(w1.dtype), w1, preferred_element_type=jnp.float32)
    h = jnp.maximum(h + b1_ref[...], 0.0)

    w2 = w2_ref[...]
    y = jnp.dot(h.astype(w2.dtype), w2, preferred_element_type=jnp.float32)
    y = y + b2_ref[...]                          # encoder output at lanes [2, 2+enc_out)

    # Fuse ego passthrough into lanes [0, NUM_ADDED) — in-vreg lane select,
    # keeps the store a single unmasked full-128-lane vst.
    lane = lax.broadcasted_iota(jnp.int32, y.shape, 1)
    out = y
    for c in range(NUM_ADDED):
        out = jnp.where(lane == c, x[:, c:c + 1], out)
    o_ref[...] = out.astype(o_ref.dtype)


def make_ego_encoder(w1, b1, w2, b2, *, compute_dtype=jnp.bfloat16,
                     num_tiles=None, tm_cap=1024):
    """Builds forward(x) = hstack(x[:, :2], MLP(x[:, 2:])).

    Weight prep (pad / shift / cast) happens here ONCE, not per call.
    """
    # PyTorch nn.Linear biases are 1-D (H,) — normalize to (1, H).
    b1 = jnp.reshape(jnp.asarray(b1), (1, -1))
    b2 = jnp.reshape(jnp.asarray(b2), (1, -1))
    w1 = jnp.asarray(w1)
    w2 = jnp.asarray(w2)

    enc_in, hidden = w1.shape
    enc_out = w2.shape[1]
    D = NUM_ADDED + enc_in
    out_cols = NUM_ADDED + enc_out
    h_pad = max(128, _round_up(hidden, 128))
    o_pad = max(128, _round_up(out_cols, 128))

    # w1 gets NUM_ADDED leading zero rows -> kernel multiplies the full-width
    # x block directly (ego columns contribute exact zeros).
    w1p = jnp.zeros((D, h_pad), compute_dtype)
    w1p = w1p.at[NUM_ADDED:, :hidden].set(w1.astype(compute_dtype))
    b1p = jnp.zeros((1, h_pad), jnp.float32).at[:, :hidden].set(b1.astype(jnp.float32))

    # w2/b2 shifted by NUM_ADDED output columns -> result lands at the final
    # column positions, no post-matmul concat needed.
    w2p = jnp.zeros((h_pad, o_pad), compute_dtype)
    w2p = w2p.at[:hidden, NUM_ADDED:NUM_ADDED + enc_out].set(w2.astype(compute_dtype))
    b2p = jnp.zeros((1, o_pad), jnp.float32)
    b2p = b2p.at[:, NUM_ADDED:NUM_ADDED + enc_out].set(b2.astype(jnp.float32))

    if num_tiles is None:
        try:  # 2 on 2-TC chips (v7x) if the device reports it; 1 otherwise.
            num_tiles = max(1, int(getattr(jax.devices()[0], "num_cores", 1)))
        except Exception:
            num_tiles = 1

    @jax.jit
    def forward(x):
        B = x.shape[0]
        tm = min(_round_up(max(-(-B // num_tiles), 1), 8), tm_cap)
        b_pad = _round_up(B, tm)
        xp = x if b_pad == B else jnp.pad(x, ((0, b_pad - B), (0, 0)))
        grid = (b_pad // tm,)

        y = pl.pallas_call(
            _fused_kernel,
            out_shape=jax.ShapeDtypeStruct((b_pad, o_pad), jnp.float32),
            grid_spec=pltpu.PrefetchScalarGridSpec(
                num_scalar_prefetch=0,
                grid=grid,
                in_specs=[
                    # batch-tiled full-width activations
                    pl.BlockSpec((tm, D), lambda i: (i, 0)),
                    # weights / biases: constant index_map -> VMEM-resident
                    pl.BlockSpec((D, h_pad), lambda i: (0, 0)),
                    pl.BlockSpec((1, h_pad), lambda i: (0, 0)),
                    pl.BlockSpec((h_pad, o_pad), lambda i: (0, 0)),
                    pl.BlockSpec((1, o_pad), lambda i: (0, 0)),
                ],
                out_specs=pl.BlockSpec((tm, o_pad), lambda i: (i, 0)),
            ),
            compiler_params=pltpu.CompilerParams(
                dimension_semantics=("parallel",),
            ),
        )(xp, w1p, b1p, w2p, b2p)

        # Single slice: ego + encoder columns are already composed in-kernel.
        # (Padded batch rows carry ReLU(b1)-derived values; sliced off here.)
        return y[:B, :out_cols]

    return forward


def reference(x, w1, b1, w2, b2):
    ego = x[:, :NUM_ADDED]
    rest = x[:, NUM_ADDED:]
    h = jnp.maximum(rest @ w1 + jnp.reshape(b1, (1, -1)), 0.0)
    y = h @ w2 + jnp.reshape(b2, (1, -1))
    return jnp.concatenate([ego, y], axis=1)


if __name__ == "__main__":
    # TODO(synk): EgoEncoder wraps an arbitrary `encoder` module; a concrete
    # 2-layer MLP is assumed here since the spec does not pin it down.
    B = 300        # not a tile multiple -> exercises the padding path
    ENC_IN = 32
    HIDDEN = 64
    ENC_OUT = 16
    D = NUM_ADDED + ENC_IN

    key = jax.random.PRNGKey(0)
    kx, k1, kb1, k2, kb2 = jax.random.split(key, 5)

    x = jax.random.normal(kx, (B, D), dtype=jnp.float32)
    w1 = jax.random.normal(k1, (ENC_IN, HIDDEN), dtype=jnp.float32) * (1.0 / ENC_IN ** 0.5)
    b1 = jax.random.normal(kb1, (HIDDEN,), dtype=jnp.float32) * 0.01   # PyTorch-style 1-D bias
    w2 = jax.random.normal(k2, (HIDDEN, ENC_OUT), dtype=jnp.float32) * (1.0 / HIDDEN ** 0.5)
    b2 = jax.random.normal(kb2, (ENC_OUT,), dtype=jnp.float32) * 0.01

    ref = reference(x, w1, b1, w2, b2)

    # f32 path, single tile (v5e/v6e default): tight tolerance.
    fwd_f32 = make_ego_encoder(w1, b1, w2, b2, compute_dtype=jnp.float32, num_tiles=1)
    out = jax.block_until_ready(fwd_f32(x))
    assert out.shape == (B, NUM_ADDED + ENC_OUT), out.shape
    assert jnp.allclose(out, ref, atol=1e-5, rtol=1e-5), "f32 mismatch vs reference"
    assert jnp.array_equal(out[:, :NUM_ADDED], x[:, :NUM_ADDED]), "ego passthrough not exact"

    # bf16 MXU path, two balanced tiles (v7x-style megacore split): loose tolerance.
    fwd_bf16 = make_ego_encoder(w1, b1, w2, b2, compute_dtype=jnp.bfloat16, num_tiles=2)
    out_bf16 = jax.block_until_ready(fwd_bf16(x))
    assert out_bf16.shape == (B, NUM_ADDED + ENC_OUT), out_bf16.shape
    assert jnp.allclose(out_bf16, ref, atol=1e-1, rtol=1e-1), "bf16 mismatch vs reference"
    assert jnp.array_equal(out_bf16[:, :NUM_ADDED], x[:, :NUM_ADDED]), "ego passthrough not exact (bf16)"

    print("KERNEL_OK")
</pallas_src>

<mosaic_0001>
module attributes {stable_mosaic.version = 11 : i64} {
  func.func @_fused_kernel(%arg0: i32, %arg1: memref<304x34xf32, #tpu.memory_space<vmem>>, %arg2: memref<34x128xf32, #tpu.memory_space<vmem>>, %arg3: memref<1x128xf32, #tpu.memory_space<vmem>>, %arg4: memref<128x128xf32, #tpu.memory_space<vmem>>, %arg5: memref<1x128xf32, #tpu.memory_space<vmem>>, %arg6: memref<304x128xf32, #tpu.memory_space<vmem>>) attributes {dimension_semantics = [#tpu.dimension_semantics<parallel>], iteration_bounds = array<i64: 1>, scalar_prefetch = 0 : i64, scratch_operands = 0 : i64, tpu.core_type = #tpu.core_type<tc>, window_params = [{transform_indices = @transform_0, window_bounds = array<i64: 304, 34>}, {pipeline_mode = #tpu.pipeline_mode<synchronous>, transform_indices = @transform_1, window_bounds = array<i64: 34, 128>}, {pipeline_mode = #tpu.pipeline_mode<synchronous>, transform_indices = @transform_2, window_bounds = array<i64: 1, 128>}, {pipeline_mode = #tpu.pipeline_mode<synchronous>, transform_indices = @transform_3, window_bounds = array<i64: 128, 128>}, {pipeline_mode = #tpu.pipeline_mode<synchronous>, transform_indices = @transform_4, window_bounds = array<i64: 1, 128>}, {transform_indices = @transform_5, window_bounds = array<i64: 304, 128>}]} {
    %c0 = arith.constant 0 : index
    %c0_0 = arith.constant 0 : index
    %0 = vector.load %arg1[%c0, %c0_0] : memref<304x34xf32, #tpu.memory_space<vmem>>, vector<304x34xf32>
    %c0_1 = arith.constant 0 : index
    %c0_2 = arith.constant 0 : index
    %1 = vector.load %arg2[%c0_1, %c0_2] : memref<34x128xf32, #tpu.memory_space<vmem>>, vector<34x128xf32>
    %cst = arith.constant dense<0.000000e+00> : vector<304x128xf32>
    %2 = tpu.matmul %0, %1, %cst {dimension_numbers = #tpu.dot_dimension_numbers<[1], [0], [0], [1], [0, 0, 1, 1], [], []>} : vector<304x34xf32>, vector<34x128xf32>, vector<304x128xf32> -> vector<304x128xf32>
    %c0_3 = arith.constant 0 : index
    %c0_4 = arith.constant 0 : index
    %3 = vector.load %arg3[%c0_3, %c0_4] : memref<1x128xf32, #tpu.memory_space<vmem>>, vector<1x128xf32>
    %4 = vector.broadcast %3 : vector<1x128xf32> to vector<304x128xf32>
    %5 = arith.addf %2, %4 : vector<304x128xf32>
    %cst_5 = arith.constant 0.000000e+00 : f32
    %6 = vector.broadcast %cst_5 : f32 to vector<304x128xf32>
    %7 = arith.maximumf %5, %6 : vector<304x128xf32>
    %c0_6 = arith.constant 0 : index
    %c0_7 = arith.constant 0 : index
    %8 = vector.load %arg4[%c0_6, %c0_7] : memref<128x128xf32, #tpu.memory_space<vmem>>, vector<128x128xf32>
    %cst_8 = arith.constant dense<0.000000e+00> : vector<304x128xf32>
    %9 = tpu.matmul %7, %8, %cst_8 {dimension_numbers = #tpu.dot_dimension_numbers<[1], [0], [0], [1], [0, 0, 1, 1], [], []>} : vector<304x128xf32>, vector<128x128xf32>, vector<304x128xf32> -> vector<304x128xf32>
    %c0_9 = arith.constant 0 : index
    %c0_10 = arith.constant 0 : index
    %10 = vector.load %arg5[%c0_9, %c0_10] : memref<1x128xf32, #tpu.memory_space<vmem>>, vector<1x128xf32>
    %11 = vector.broadcast %10 : vector<1x128xf32> to vector<304x128xf32>
    %12 = arith.addf %9, %11 : vector<304x128xf32>
    %13 = tpu.iota {dimensions = array<i32: 1>} : vector<304x128xi32>
    %c0_i32 = arith.constant 0 : i32
    %14 = vector.broadcast %c0_i32 : i32 to vector<304x128xi32>
    %15 = arith.cmpi eq, %13, %14 : vector<304x128xi32>
    %16 = vector.extract_strided_slice %0 {offsets = [0, 0], sizes = [304, 1], strides = [1, 1]} : vector<304x34xf32> to vector<304x1xf32>
    %17 = vector.shape_cast %16 : vector<304x1xf32> to vector<304x1xf32>
    %18 = vector.broadcast %17 : vector<304x1xf32> to vector<304x128xf32>
    %19 = arith.select %15, %18, %12 : vector<304x128xi1>, vector<304x128xf32>
    %c1_i32 = arith.constant 1 : i32
    %20 = vector.broadcast %c1_i32 : i32 to vector<304x128xi32>
    %21 = arith.cmpi eq, %13, %20 : vector<304x128xi32>
    %22 = vector.extract_strided_slice %0 {offsets = [0, 1], sizes = [304, 1], strides = [1, 1]} : vector<304x34xf32> to vector<304x1xf32>
    %23 = vector.shape_cast %22 : vector<304x1xf32> to vector<304x1xf32>
    %24 = vector.broadcast %23 : vector<304x1xf32> to vector<304x128xf32>
    %25 = arith.select %21, %24, %19 : vector<304x128xi1>, vector<304x128xf32>
    %c0_11 = arith.constant 0 : index
    %c0_12 = arith.constant 0 : index
    %26 = vector.load %arg6[%c0_11, %c0_12] : memref<304x128xf32, #tpu.memory_space<vmem>>, vector<304x128xf32>
    tpu.vector_store %arg6[%c0_11, %c0_12], %25 {strides = array<i32>} : memref<304x128xf32, #tpu.memory_space<vmem>>, vector<304x128xf32>,
    return
  }
  func.func @transform_0(%arg0: i32) -> (i32, i32) {
    %c0_i32 = arith.constant 0 : i32
    %c0_i32_0 = arith.constant 0 : i32
    return %arg0, %c0_i32 : i32, i32
  }
  func.func @transform_1(%arg0: i32) -> (i32, i32) {
    %c0_i32 = arith.constant 0 : i32
    %c0_i32_0 = arith.constant 0 : i32
    %c0_i32_1 = arith.constant 0 : i32
    return %c0_i32, %c0_i32_0 : i32, i32
  }
  func.func @transform_2(%arg0: i32) -> (i32, i32) {
    %c0_i32 = arith.constant 0 : i32
    %c0_i32_0 = arith.constant 0 : i32
    %c0_i32_1 = arith.constant 0 : i32
    return %c0_i32, %c0_i32_0 : i32, i32
  }
  func.func @transform_3(%arg0: i32) -> (i32, i32) {
    %c0_i32 = arith.constant 0 : i32
    %c0_i32_0 = arith.constant 0 : i32
    %c0_i32_1 = arith.constant 0 : i32
    return %c0_i32, %c0_i32_0 : i32, i32
  }
  func.func @transform_4(%arg0: i32) -> (i32, i32) {
    %c0_i32 = arith.constant 0 : i32
    %c0_i32_0 = arith.constant 0 : i32
    %c0_i32_1 = arith.constant 0 : i32
    return %c0_i32, %c0_i32_0 : i32, i32
  }
  func.func @transform_5(%arg0: i32) -> (i32, i32) {
    %c0_i32 = arith.constant 0 : i32
    %c0_i32_0 = arith.constant 0 : i32
    return %arg0, %c0_i32 : i32, i32
  }
}

</mosaic_0001>

<llo_original>
// kernel: forward.1
$region0: #{forward.1}
  #allocation0 [shape = 'u32[]', space=smem, size = 0x4, offset = 0x4, fixed_abs, tag = 'smem constant byte address 0x4 - core index']
  #allocation1 [shape = 'u32[144,128]{1,0:T(1,128)}', space=vmem, size = 0x12000, scoped, tag = 'internal scratch']
  %s0 = inlined_call_operand.vmem [shape: f32[304,34], index: 0, kind: input, shape index: {}]
  %s1 = inlined_call_operand.vmem [shape: f32[34,128], index: 1, kind: input, shape index: {}]
  %s2 = inlined_call_operand.vmem [shape: f32[1,128], index: 2, kind: input, shape index: {}]
  %s3 = inlined_call_operand.vmem [shape: f32[128,128], index: 3, kind: input, shape index: {}]
  %s4 = inlined_call_operand.vmem [shape: f32[1,128], index: 4, kind: input, shape index: {}]
  %s5 = inlined_call_operand.vmem [shape: f32[304,128], index: 5, kind: output, shape index: {}]
  %s6 = sld [smem:[#allocation0]]
  $region30: #{forward.1} parent=0
    _
  %s8 = ssub.s32 1, %s6
  %s9 = scalar_select 0, %s8, %s6
  // Predicated region
  $region2: #{forward.1} parent=0 // pred_check
    _
  $region3: #{forward.1} parent=0 // pred_check_branch
    %11 = sbr.rel (0) target = $region5
  $region4: #{forward.1} parent=0 // pred_region
    _
  $region5: #{forward.1} parent=0 // pred_fallthru
    _
  // Predicated region
  $region6: #{forward.1} parent=0 // pred_check
    _
  $region7: #{forward.1} parent=0 // pred_check_branch
    %13 = sbr.rel (0) target = $region9
  $region8: #{forward.1} parent=0 // pred_region
    _
  $region9: #{forward.1} parent=0 // pred_fallthru
    _
  // Predicated region
  $region10: #{forward.1} parent=0 // pred_check
    _
  $region11: #{forward.1} parent=0 // pred_check_branch
    %15 = sbr.rel (0) target = $region13
  $region12: #{forward.1} parent=0 // pred_region
    _
  $region13: #{forward.1} parent=0 // pred_fallthru
    _
  // Predicated region
  $region14: #{forward.1} parent=0 // pred_check
    _
  $region15: #{forward.1} parent=0 // pred_check_branch
    %17 = sbr.rel (0) target = $region17
  $region16: #{forward.1} parent=0 // pred_region
    _
  $region17: #{forward.1} parent=0 // pred_fallthru
    _
  // Predicated region
  $region18: #{forward.1} parent=0 // pred_check
    _
  $region19: #{forward.1} parent=0 // pred_check_branch
    %19 = sbr.rel (0) target = $region21
  $region20: #{forward.1} parent=0 // pred_region
    _
  $region21: #{forward.1} parent=0 // pred_fallthru
    _
  %v20 = vld [vmem:[%s0] sm:$0xff]
  %v21 = vld [vmem:[%s0 + $0x8] sm:$0xff]
  %v22 = vld [vmem:[%s0 + $0x10] sm:$0xff]
  %v23 = vld [vmem:[%s0 + $0x18] sm:$0xff]
  %v24 = vld [vmem:[%s0 + $0x20] sm:$0xff]
  %v25 = vld [vmem:[%s0 + $0x28] sm:$0xff]
  %v26 = vld [vmem:[%s0 + $0x30] sm:$0xff]
  %v27 = vld [vmem:[%s0 + $0x38] sm:$0xff]
  %v28 = vld [vmem:[%s0 + $0x40] sm:$0xff]
  %v29 = vld [vmem:[%s0 + $0x48] sm:$0xff]
  %v30 = vld [vmem:[%s0 + $0x50] sm:$0xff]
  %v31 = vld [vmem:[%s0 + $0x58] sm:$0xff]
  %v32 = vld [vmem:[%s0 + $0x60] sm:$0xff]
  %v33 = vld [vmem:[%s0 + $0x68] sm:$0xff]
  %v34 = vld [vmem:[%s0 + $0x70] sm:$0xff]
  %v35 = vld [vmem:[%s0 + $0x78] sm:$0xff]
  %v36 = vld [vmem:[%s0 + $0x80] sm:$0xff]
  %v37 = vld [vmem:[%s0 + $0x88] sm:$0xff]
  %v38 = vld [vmem:[%s0 + $0x90] sm:$0xff]
  %v39 = vld [vmem:[%s0 + $0x98] sm:$0xff]
  %v40 = vld [vmem:[%s0 + $0xa0] sm:$0xff]
  %v41 = vld [vmem:[%s0 + $0xa8] sm:$0xff]
  %v42 = vld [vmem:[%s0 + $0xb0] sm:$0xff]
  %v43 = vld [vmem:[%s0 + $0xb8] sm:$0xff]
  %v44 = vld [vmem:[%s0 + $0xc0] sm:$0xff]
  %v45 = vld [vmem:[%s0 + $0xc8] sm:$0xff]
  %v46 = vld [vmem:[%s0 + $0xd0] sm:$0xff]
  %v47 = vld [vmem:[%s0 + $0xd8] sm:$0xff]
  %v48 = vld [vmem:[%s0 + $0xe0] sm:$0xff]
  %v49 = vld [vmem:[%s0 + $0xe8] sm:$0xff]
  %v50 = vld [vmem:[%s0 + $0xf0] sm:$0xff]
  %v51 = vld [vmem:[%s0 + $0xf8] sm:$0xff]
  %v52 = vld [vmem:[%s0 + $0x100] sm:$0xff]
  %v53 = vld [vmem:[%s0 + $0x108] sm:$0xff]
  %v54 = vld [vmem:[%s0 + $0x110] sm:$0xff]
  %v55 = vld [vmem:[%s0 + $0x118] sm:$0xff]
  %v56 = vld [vmem:[%s0 + $0x120] sm:$0xff]
  %v57 = vld [vmem:[%s0 + $0x128] sm:$0xff]
  %v58 = vld [vmem:[%s1] sm:$0xff]
  %v59 = vld [vmem:[%s1 + $0x8] sm:$0xff]
  %v60 = vld [vmem:[%s1 + $0x10] sm:$0xff]
  %v61 = vld [vmem:[%s1 + $0x18] sm:$0xff]
  %v62 = vld [vmem:[%s1 + $0x20] sm:$0x3]
  %v63 = vld [vmem:[%s2] sm:$0x1]
  %v65 = vlaneseq
  %v66 = vshrl.u32 %v65, 7
  %v67 = vsub.s32 0, %v66
  %v68 = vrot.slane %v63, %v67
  %vm70 = vcmask 277504
  %v72 = vsel %vm70, %v20, 0
  %v75 = vsel %vm70, %v21, 0
  %v78 = vsel %vm70, %v22, 0
  %v81 = vsel %vm70, %v23, 0
  %v84 = vsel %vm70, %v24, 0
  %v87 = vsel %vm70, %v25, 0
  %v90 = vsel %vm70, %v26, 0
  %v93 = vsel %vm70, %v27, 0
  %v96 = vsel %vm70, %v28, 0
  %v99 = vsel %vm70, %v29, 0
  %v102 = vsel %vm70, %v30, 0
  %v105 = vsel %vm70, %v31, 0
  %v108 = vsel %vm70, %v32, 0
  %v111 = vsel %vm70, %v33, 0
  %v114 = vsel %vm70, %v34, 0
  %v117 = vsel %vm70, %v35, 0
  %v120 = vsel %vm70, %v36, 0
  %v123 = vsel %vm70, %v37, 0
  %v126 = vsel %vm70, %v38, 0
  %v129 = vsel %vm70, %v39, 0
  %v132 = vsel %vm70, %v40, 0
  %v135 = vsel %vm70, %v41, 0
  %v138 = vsel %vm70, %v42, 0
  %v141 = vsel %vm70, %v43, 0
  %v144 = vsel %vm70, %v44, 0
  %v147 = vsel %vm70, %v45, 0
  %v150 = vsel %vm70, %v46, 0
  %v153 = vsel %vm70, %v47, 0
  %v156 = vsel %vm70, %v48, 0
  %v159 = vsel %vm70, %v49, 0
  %v162 = vsel %vm70, %v50, 0
  %v165 = vsel %vm70, %v51, 0
  %v168 = vsel %vm70, %v52, 0
  %v171 = vsel %vm70, %v53, 0
  %v174 = vsel %vm70, %v54, 0
  %v177 = vsel %vm70, %v55, 0
  %v180 = vsel %vm70, %v56, 0
  %v183 = vsel %vm70, %v57, 0
  %vm185 = vcmask 1041408
  %v187 = vsel %vm185, %v62, 0
  %189 = vmatprep.subr.mxu0 0.0
  %190 = vmatpush1.msra.mxu0 0.0
  %191 = vmatprep.subr.mxu0 0.0
  %192 = vmatpush1.msra.mxu0 0.0
  %193 = vmatprep.subr.mxu0 0.0
  %194 = vmatpush1.msra.mxu0 0.0
  %195 = vmatprep.subr.mxu0 0.0
  %196 = vmatpush1.msra.mxu0 0.0
  %197 = vmatprep.subr.mxu0 0.0
  %198 = vmatpush1.msra.mxu0 0.0
  %199 = vmatprep.subr.mxu0 0.0
  %200 = vmatpush1.msra.mxu0 0.0
  %201 = vmatprep.subr.mxu0 0.0
  %202 = vmatpush1.msra.mxu0 0.0
  %203 = vmatprep.subr.mxu0 0.0
  %204 = vmatpush1.msra.mxu0 0.0
  %205 = vmatprep.subr.mxu0 0.0
  %206 = vmatpush1.msra.mxu0 0.0
  %207 = vmatprep.subr.mxu0 0.0
  %208 = vmatpush1.msra.mxu0 0.0
  %209 = vmatprep.subr.mxu0 0.0
  %210 = vmatpush1.msra.mxu0 0.0
  %211 = vmatprep.subr.mxu0 0.0
  %212 = vmatpush1.msra.mxu0 %v187
  %213 = vmatprep.subr.mxu0 0.0
  %214 = vmatpush1.msra.mxu0 %v61
  %215 = vmatprep.subr.mxu0 0.0
  %216 = vmatpush1.msra.mxu0 %v60
  %217 = vmatprep.subr.mxu0 0.0
  %218 = vmatpush1.msra.mxu0 %v59
  %219 = vmatprep.subr.mxu0 0.0
  %220 = vmatpush1.msra.mxu0 %v58
  %221 = vmatprep.subr.mxu0 0.0
  %222 = vmatpush2.msra.mxu0 0.0
  %223 = vmatprep.subr.mxu0 0.0
  %224 = vmatpush2.msra.mxu0 0.0
  %225 = vmatprep.subr.mxu0 0.0
  %226 = vmatpush2.msra.mxu0 0.0
  %227 = vmatprep.subr.mxu0 0.0
  %228 = vmatpush2.msra.mxu0 0.0
  %229 = vmatprep.subr.mxu0 0.0
  %230 = vmatpush2.msra.mxu0 0.0
  %231 = vmatprep.subr.mxu0 0.0
  %232 = vmatpush2.msra.mxu0 0.0
  %233 = vmatprep.subr.mxu0 0.0
  %234 = vmatpush2.msra.mxu0 0.0
  %235 = vmatprep.subr.mxu0 0.0
  %236 = vmatpush2.msra.mxu0 0.0
  %237 = vmatprep.subr.mxu0 0.0
  %238 = vmatpush2.msra.mxu0 0.0
  %239 = vmatprep.subr.mxu0 0.0
  %240 = vmatpush2.msra.mxu0 0.0
  %241 = vmatprep.subr.mxu0 0.0
  %242 = vmatpush2.msra.mxu0 0.0
  %243 = vmatprep.subr.mxu0 0.0
  %244 = vmatpush2.msra.mxu0 0.0
  %245 = vmatprep.subr.mxu0 0.0
  %246 = vmatpush2.msra.mxu0 0.0
  %247 = vmatprep.subr.mxu0 0.0
  %248 = vmatpush2.msra.mxu0 0.0
  %249 = vmatprep.subr.mxu0 0.0
  %250 = vmatpush2.msra.mxu0 0.0
  %251 = vmatprep.subr.mxu0 0.0
  %252 = vmatpush2.msra.mxu0 0.0
  %253 = vmatprep.mubr.f32.mxu0 0.0
  %254 = vmatmul.mubr.f32.gmra.mxu0 %v72
  %v255 = vpop.f32.mrf.mxu0
  %v256 = vadd.f32 %v68, %v255
  %v257 = vpop.f32.mrf.mxu0
  %258 = vmatprep.mubr.f32.mxu0 0.0
  %259 = vmatmul.mubr.f32.gmra.mxu0 %v75
  %v260 = vpop.f32.mrf.mxu0
  %v261 = vadd.f32 %v68, %v260
  %v262 = vpop.f32.mrf.mxu0
  %263 = vmatprep.mubr.f32.mxu0 0.0
  %264 = vmatmul.mubr.f32.gmra.mxu0 %v78
  %v265 = vpop.f32.mrf.mxu0
  %v266 = vadd.f32 %v68, %v265
  %v267 = vpop.f32.mrf.mxu0
  %268 = vmatprep.mubr.f32.mxu0 0.0
  %269 = vmatmul.mubr.f32.gmra.mxu0 %v81
  %v270 = vpop.f32.mrf.mxu0
  %v271 = vadd.f32 %v68, %v270
  %v272 = vpop.f32.mrf.mxu0
  %273 = vmatprep.mubr.f32.mxu0 0.0
  %274 = vmatmul.mubr.f32.gmra.mxu0 %v84
  %v275 = vpop.f32.mrf.mxu0
  %v276 = vadd.f32 %v68, %v275
  %v277 = vpop.f32.mrf.mxu0
  %278 = vmatprep.mubr.f32.mxu0 0.0
  %279 = vmatmul.mubr.f32.gmra.mxu0 %v87
  %v280 = vpop.f32.mrf.mxu0
  %v281 = vadd.f32 %v68, %v280
  %v282 = vpop.f32.mrf.mxu0
  %283 = vmatprep.mubr.f32.mxu0 0.0
  %284 = vmatmul.mubr.f32.gmra.mxu0 %v90
  %v285 = vpop.f32.mrf.mxu0
  %v286 = vadd.f32 %v68, %v285
  %v287 = vpop.f32.mrf.mxu0
  %288 = vmatprep.mubr.f32.mxu0 0.0
  %289 = vmatmul.mubr.f32.gmra.mxu0 %v93
  %v290 = vpop.f32.mrf.mxu0
  %v291 = vadd.f32 %v68, %v290
  %v292 = vpop.f32.mrf.mxu0
  %293 = vmatprep.mubr.f32.mxu0 0.0
  %294 = vmatmul.mubr.f32.gmra.mxu0 %v96
  %v295 = vpop.f32.mrf.mxu0
  %v296 = vadd.f32 %v68, %v295
  %v297 = vpop.f32.mrf.mxu0
  %298 = vmatprep.mubr.f32.mxu0 0.0
  %299 = vmatmul.mubr.f32.gmra.mxu0 %v99
  %v300 = vpop.f32.mrf.mxu0
  %v301 = vadd.f32 %v68, %v300
  %v302 = vpop.f32.mrf.mxu0
  %303 = vmatprep.mubr.f32.mxu0 0.0
  %304 = vmatmul.mubr.f32.gmra.mxu0 %v102
  %v305 = vpop.f32.mrf.mxu0
  %v306 = vadd.f32 %v68, %v305
  %v307 = vpop.f32.mrf.mxu0
  %308 = vmatprep.mubr.f32.mxu0 0.0
  %309 = vmatmul.mubr.f32.gmra.mxu0 %v105
  %v310 = vpop.f32.mrf.mxu0
  %v311 = vadd.f32 %v68, %v310
  %v312 = vpop.f32.mrf.mxu0
  %313 = vmatprep.mubr.f32.mxu0 0.0
  %314 = vmatmul.mubr.f32.gmra.mxu0 %v108
  %v315 = vpop.f32.mrf.mxu0
  %v316 = vadd.f32 %v68, %v315
  %v317 = vpop.f32.mrf.mxu0
  %318 = vmatprep.mubr.f32.mxu0 0.0
  %319 = vmatmul.mubr.f32.gmra.mxu0 %v111
  %v320 = vpop.f32.mrf.mxu0
  %v321 = vadd.f32 %v68, %v320
  %v322 = vpop.f32.mrf.mxu0
  %323 = vmatprep.mubr.f32.mxu0 0.0
  %324 = vmatmul.mubr.f32.gmra.mxu0 %v114
  %v325 = vpop.f32.mrf.mxu0
  %v326 = vadd.f32 %v68, %v325
  %v327 = vpop.f32.mrf.mxu0
  %328 = vmatprep.mubr.f32.mxu0 0.0
  %329 = vmatmul.mubr.f32.gmra.mxu0 %v117
  %v330 = vpop.f32.mrf.mxu0
  %v331 = vadd.f32 %v68, %v330
  %v332 = vpop.f32.mrf.mxu0
  %333 = vmatprep.mubr.f32.mxu0 0.0
  %334 = vmatmul.mubr.f32.gmra.mxu0 %v120
  %v335 = vpop.f32.mrf.mxu0
  %v336 = vadd.f32 %v68, %v335
  %v337 = vpop.f32.mrf.mxu0
  %338 = vmatprep.mubr.f32.mxu0 0.0
  %339 = vmatmul.mubr.f32.gmra.mxu0 %v123
  %v340 = vpop.f32.mrf.mxu0
  %v341 = vadd.f32 %v68, %v340
  %v342 = vpop.f32.mrf.mxu0
  %343 = vmatprep.mubr.f32.mxu0 0.0
  %344 = vmatmul.mubr.f32.gmra.mxu0 %v126
  %v345 = vpop.f32.mrf.mxu0
  %v346 = vadd.f32 %v68, %v345
  %v347 = vpop.f32.mrf.mxu0
  %348 = vmatprep.mubr.f32.mxu0 0.0
  %349 = vmatmul.mubr.f32.gmra.mxu0 %v129
  %v350 = vpop.f32.mrf.mxu0
  %v351 = vadd.f32 %v68, %v350
  %v352 = vpop.f32.mrf.mxu0
  %353 = vmatprep.mubr.f32.mxu0 0.0
  %354 = vmatmul.mubr.f32.gmra.mxu0 %v132
  %v355 = vpop.f32.mrf.mxu0
  %v356 = vadd.f32 %v68, %v355
  %v357 = vpop.f32.mrf.mxu0
  %358 = vmatprep.mubr.f32.mxu0 0.0
  %359 = vmatmul.mubr.f32.gmra.mxu0 %v135
  %v360 = vpop.f32.mrf.mxu0
  %v361 = vadd.f32 %v68, %v360
  %v362 = vpop.f32.mrf.mxu0
  %363 = vmatprep.mubr.f32.mxu0 0.0
  %364 = vmatmul.mubr.f32.gmra.mxu0 %v138
  %v365 = vpop.f32.mrf.mxu0
  %v366 = vadd.f32 %v68, %v365
  %v367 = vpop.f32.mrf.mxu0
  %368 = vmatprep.mubr.f32.mxu0 0.0
  %369 = vmatmul.mubr.f32.gmra.mxu0 %v141
  %v370 = vpop.f32.mrf.mxu0
  %v371 = vadd.f32 %v68, %v370
  %v372 = vpop.f32.mrf.mxu0
  %373 = vmatprep.mubr.f32.mxu0 0.0
  %374 = vmatmul.mubr.f32.gmra.mxu0 %v144
  %v375 = vpop.f32.mrf.mxu0
  %v376 = vadd.f32 %v68, %v375
  %v377 = vpop.f32.mrf.mxu0
  %378 = vmatprep.mubr.f32.mxu0 0.0
  %379 = vmatmul.mubr.f32.gmra.mxu0 %v147
  %v380 = vpop.f32.mrf.mxu0
  %v381 = vadd.f32 %v68, %v380
  %v382 = vpop.f32.mrf.mxu0
  %383 = vmatprep.mubr.f32.mxu0 0.0
  %384 = vmatmul.mubr.f32.gmra.mxu0 %v150
  %v385 = vpop.f32.mrf.mxu0
  %v386 = vadd.f32 %v68, %v385
  %v387 = vpop.f32.mrf.mxu0
  %388 = vmatprep.mubr.f32.mxu0 0.0
  %389 = vmatmul.mubr.f32.gmra.mxu0 %v153
  %v390 = vpop.f32.mrf.mxu0
  %v391 = vadd.f32 %v68, %v390
  %v392 = vpop.f32.mrf.mxu0
  %393 = vmatprep.mubr.f32.mxu0 0.0
  %394 = vmatmul.mubr.f32.gmra.mxu0 %v156
  %v395 = vpop.f32.mrf.mxu0
  %v396 = vadd.f32 %v68, %v395
  %v397 = vpop.f32.mrf.mxu0
  %398 = vmatprep.mubr.f32.mxu0 0.0
  %399 = vmatmul.mubr.f32.gmra.mxu0 %v159
  %v400 = vpop.f32.mrf.mxu0
  %v401 = vadd.f32 %v68, %v400
  %v402 = vpop.f32.mrf.mxu0
  %403 = vmatprep.mubr.f32.mxu0 0.0
  %404 = vmatmul.mubr.f32.gmra.mxu0 %v162
  %v405 = vpop.f32.mrf.mxu0
  %v406 = vadd.f32 %v68, %v405
  %v407 = vpop.f32.mrf.mxu0
  %408 = vmatprep.mubr.f32.mxu0 0.0
  %409 = vmatmul.mubr.f32.gmra.mxu0 %v165
  %v410 = vpop.f32.mrf.mxu0
  %v411 = vadd.f32 %v68, %v410
  %v412 = vpop.f32.mrf.mxu0
  %413 = vmatprep.mubr.f32.mxu0 0.0
  %414 = vmatmul.mubr.f32.gmra.mxu0 %v168
  %v415 = vpop.f32.mrf.mxu0
  %v416 = vadd.f32 %v68, %v415
  %v417 = vpop.f32.mrf.mxu0
  %418 = vmatprep.mubr.f32.mxu0 0.0
  %419 = vmatmul.mubr.f32.gmra.mxu0 %v171
  %v420 = vpop.f32.mrf.mxu0
  %v421 = vadd.f32 %v68, %v420
  %v422 = vpop.f32.mrf.mxu0
  %423 = vmatprep.mubr.f32.mxu0 0.0
  %424 = vmatmul.mubr.f32.gmra.mxu0 %v174
  %v425 = vpop.f32.mrf.mxu0
  %v426 = vadd.f32 %v68, %v425
  %v427 = vpop.f32.mrf.mxu0
  %428 = vmatprep.mubr.f32.mxu0 0.0
  %429 = vmatmul.mubr.f32.gmra.mxu0 %v177
  %v430 = vpop.f32.mrf.mxu0
  %v431 = vadd.f32 %v68, %v430
  %v432 = vpop.f32.mrf.mxu0
  %433 = vmatprep.mubr.f32.mxu0 0.0
  %434 = vmatmul.mubr.f32.gmra.mxu0 %v180
  %v435 = vpop.f32.mrf.mxu0
  %v436 = vadd.f32 %v68, %v435
  %v437 = vpop.f32.mrf.mxu0
  %438 = vmatprep.mubr.f32.mxu0 0.0
  %439 = vmatmul.mubr.f32.gmra.mxu0 %v183
  %v440 = vpop.f32.mrf.mxu0
  %v441 = vadd.f32 %v68, %v440
  %v442 = vpop.f32.mrf.mxu0
  %443 = vdwg.mxu0
  %v444 = vmax.f32 %v256, 0.0
  %v445 = vmax.f32 %v261, 0.0
  %v446 = vmax.f32 %v266, 0.0
  %v447 = vmax.f32 %v271, 0.0
  %v448 = vmax.f32 %v276, 0.0
  %v449 = vmax.f32 %v281, 0.0
  %v450 = vmax.f32 %v286, 0.0
  %v451 = vmax.f32 %v291, 0.0
  %v452 = vmax.f32 %v296, 0.0
  %v453 = vmax.f32 %v301, 0.0
  %v454 = vmax.f32 %v306, 0.0
  %v455 = vmax.f32 %v311, 0.0
  %v456 = vmax.f32 %v316, 0.0
  %v457 = vmax.f32 %v321, 0.0
  %v458 = vmax.f32 %v326, 0.0
  %v459 = vmax.f32 %v331, 0.0
  %v460 = vmax.f32 %v336, 0.0
  %v461 = vmax.f32 %v341, 0.0
  %v462 = vmax.f32 %v346, 0.0
  %v463 = vmax.f32 %v351, 0.0
  %v464 = vmax.f32 %v356, 0.0
  %v465 = vmax.f32 %v361, 0.0
  %v466 = vmax.f32 %v366, 0.0
  %v467 = vmax.f32 %v371, 0.0
  %v468 = vmax.f32 %v376, 0.0
  %v469 = vmax.f32 %v381, 0.0
  %v470 = vmax.f32 %v386, 0.0
  %v471 = vmax.f32 %v391, 0.0
  %v472 = vmax.f32 %v396, 0.0
  %v473 = vmax.f32 %v401, 0.0
  %v474 = vmax.f32 %v406, 0.0
  %v475 = vmax.f32 %v411, 0.0
  %v476 = vmax.f32 %v416, 0.0
  %v477 = vmax.f32 %v421, 0.0
  %v478 = vmax.f32 %v426, 0.0
  %v479 = vmax.f32 %v431, 0.0
  %v480 = vmax.f32 %v436, 0.0
  %v481 = vmax.f32 %v441, 0.0
  %v482 = vld [vmem:[%s3] sm:$0xff]
  %v483 = vld [vmem:[%s3 + $0x8] sm:$0xff]
  %v484 = vld [vmem:[%s3 + $0x10] sm:$0xff]
  %v485 = vld [vmem:[%s3 + $0x18] sm:$0xff]
  %v486 = vld [vmem:[%s3 + $0x20] sm:$0xff]
  %v487 = vld [vmem:[%s3 + $0x28] sm:$0xff]
  %v488 = vld [vmem:[%s3 + $0x30] sm:$0xff]
  %v489 = vld [vmem:[%s3 + $0x38] sm:$0xff]
  %v490 = vld [vmem:[%s3 + $0x40] sm:$0xff]
  %v491 = vld [vmem:[%s3 + $0x48] sm:$0xff]
  %v492 = vld [vmem:[%s3 + $0x50] sm:$0xff]
  %v493 = vld [vmem:[%s3 + $0x58] sm:$0xff]
  %v494 = vld [vmem:[%s3 + $0x60] sm:$0xff]
  %v495 = vld [vmem:[%s3 + $0x68] sm:$0xff]
  %v496 = vld [vmem:[%s3 + $0x70] sm:$0xff]
  %v497 = vld [vmem:[%s3 + $0x78] sm:$0xff]
  %v498 = vld [vmem:[%s4] sm:$0x1]
  %v500 = vlaneseq
  %v501 = vshrl.u32 %v500, 7
  %v502 = vsub.s32 0, %v501
  %v503 = vrot.slane %v498, %v502
  %505 = vmatprep.subr.mxu0 0.0
  %506 = vmatpush1.msra.mxu0 %v497
  %507 = vmatprep.subr.mxu0 0.0
  %508 = vmatpush1.msra.mxu0 %v496
  %509 = vmatprep.subr.mxu0 0.0
  %510 = vmatpush1.msra.mxu0 %v495
  %511 = vmatprep.subr.mxu0 0.0
  %512 = vmatpush1.msra.mxu0 %v494
  %513 = vmatprep.subr.mxu0 0.0
  %514 = vmatpush1.msra.mxu0 %v493
  %515 = vmatprep.subr.mxu0 0.0
  %516 = vmatpush1.msra.mxu0 %v492
  %517 = vmatprep.subr.mxu0 0.0
  %518 = vmatpush1.msra.mxu0 %v491
  %519 = vmatprep.subr.mxu0 0.0
  %520 = vmatpush1.msra.mxu0 %v490
  %521 = vmatprep.subr.mxu0 0.0
  %522 = vmatpush1.msra.mxu0 %v489
  %523 = vmatprep.subr.mxu0 0.0
  %524 = vmatpush1.msra.mxu0 %v488
  %525 = vmatprep.subr.mxu0 0.0
  %526 = vmatpush1.msra.mxu0 %v487
  %527 = vmatprep.subr.mxu0 0.0
  %528 = vmatpush1.msra.mxu0 %v486
  %529 = vmatprep.subr.mxu0 0.0
  %530 = vmatpush1.msra.mxu0 %v485
  %531 = vmatprep.subr.mxu0 0.0
  %532 = vmatpush1.msra.mxu0 %v484
  %533 = vmatprep.subr.mxu0 0.0
  %534 = vmatpush1.msra.mxu0 %v483
  %535 = vmatprep.subr.mxu0 0.0
  %536 = vmatpush1.msra.mxu0 %v482
  %537 = vmatprep.subr.mxu0 0.0
  %538 = vmatpush2.msra.mxu0 0.0
  %539 = vmatprep.subr.mxu0 0.0
  %540 = vmatpush2.msra.mxu0 0.0
  %541 = vmatprep.subr.mxu0 0.0
  %542 = vmatpush2.msra.mxu0 0.0
  %543 = vmatprep.subr.mxu0 0.0
  %544 = vmatpush2.msra.mxu0 0.0
  %545 = vmatprep.subr.mxu0 0.0
  %546 = vmatpush2.msra.mxu0 0.0
  %547 = vmatprep.subr.mxu0 0.0
  %548 = vmatpush2.msra.mxu0 0.0
  %549 = vmatprep.subr.mxu0 0.0
  %550 = vmatpush2.msra.mxu0 0.0
  %551 = vmatprep.subr.mxu0 0.0
  %552 = vmatpush2.msra.mxu0 0.0
  %553 = vmatprep.subr.mxu0 0.0
  %554 = vmatpush2.msra.mxu0 0.0
  %555 = vmatprep.subr.mxu0 0.0
  %556 = vmatpush2.msra.mxu0 0.0
  %557 = vmatprep.subr.mxu0 0.0
  %558 = vmatpush2.msra.mxu0 0.0
  %559 = vmatprep.subr.mxu0 0.0
  %560 = vmatpush2.msra.mxu0 0.0
  %561 = vmatprep.subr.mxu0 0.0
  %562 = vmatpush2.msra.mxu0 0.0
  %563 = vmatprep.subr.mxu0 0.0
  %564 = vmatpush2.msra.mxu0 0.0
  %565 = vmatprep.subr.mxu0 0.0
  %566 = vmatpush2.msra.mxu0 0.0
  %567 = vmatprep.subr.mxu0 0.0
  %568 = vmatpush2.msra.mxu0 0.0
  %569 = vmatprep.mubr.f32.mxu0 0.0
  %570 = vmatmul.mubr.f32.gmra.mxu0 %v444
  %v571 = vpop.f32.mrf.mxu0
  %v572 = vadd.f32 %v503, %v571
  %v573 = vpop.f32.mrf.mxu0
  %574 = vmatprep.mubr.f32.mxu0 0.0
  %575 = vmatmul.mubr.f32.gmra.mxu0 %v445
  %v576 = vpop.f32.mrf.mxu0
  %v577 = vadd.f32 %v503, %v576
  %v578 = vpop.f32.mrf.mxu0
  %579 = vmatprep.mubr.f32.mxu0 0.0
  %580 = vmatmul.mubr.f32.gmra.mxu0 %v446
  %v581 = vpop.f32.mrf.mxu0
  %v582 = vadd.f32 %v503, %v581
  %v583 = vpop.f32.mrf.mxu0
  %584 = vmatprep.mubr.f32.mxu0 0.0
  %585 = vmatmul.mubr.f32.gmra.mxu0 %v447
  %v586 = vpop.f32.mrf.mxu0
  %v587 = vadd.f32 %v503, %v586
  %v588 = vpop.f32.mrf.mxu0
  %589 = vmatprep.mubr.f32.mxu0 0.0
  %590 = vmatmul.mubr.f32.gmra.mxu0 %v448
  %v591 = vpop.f32.mrf.mxu0
  %v592 = vadd.f32 %v503, %v591
  %v593 = vpop.f32.mrf.mxu0
  %594 = vmatprep.mubr.f32.mxu0 0.0
  %595 = vmatmul.mubr.f32.gmra.mxu0 %v449
  %v596 = vpop.f32.mrf.mxu0
  %v597 = vadd.f32 %v503, %v596
  %v598 = vpop.f32.mrf.mxu0
  %599 = vmatprep.mubr.f32.mxu0 0.0
  %600 = vmatmul.mubr.f32.gmra.mxu0 %v450
  %v601 = vpop.f32.mrf.mxu0
  %v602 = vadd.f32 %v503, %v601
  %v603 = vpop.f32.mrf.mxu0
  %604 = vmatprep.mubr.f32.mxu0 0.0
  %605 = vmatmul.mubr.f32.gmra.mxu0 %v451
  %v606 = vpop.f32.mrf.mxu0
  %v607 = vadd.f32 %v503, %v606
  %v608 = vpop.f32.mrf.mxu0
  %609 = vmatprep.mubr.f32.mxu0 0.0
  %610 = vmatmul.mubr.f32.gmra.mxu0 %v452
  %v611 = vpop.f32.mrf.mxu0
  %v612 = vadd.f32 %v503, %v611
  %v613 = vpop.f32.mrf.mxu0
  %614 = vmatprep.mubr.f32.mxu0 0.0
  %615 = vmatmul.mubr.f32.gmra.mxu0 %v453
  %v616 = vpop.f32.mrf.mxu0
  %v617 = vadd.f32 %v503, %v616
  %v618 = vpop.f32.mrf.mxu0
  %619 = vmatprep.mubr.f32.mxu0 0.0
  %620 = vmatmul.mubr.f32.gmra.mxu0 %v454
  %v621 = vpop.f32.mrf.mxu0
  %v622 = vadd.f32 %v503, %v621
  %v623 = vpop.f32.mrf.mxu0
  %624 = vmatprep.mubr.f32.mxu0 0.0
  %625 = vmatmul.mubr.f32.gmra.mxu0 %v455
  %v626 = vpop.f32.mrf.mxu0
  %v627 = vadd.f32 %v503, %v626
  %v628 = vpop.f32.mrf.mxu0
  %629 = vmatprep.mubr.f32.mxu0 0.0
  %630 = vmatmul.mubr.f32.gmra.mxu0 %v456
  %v631 = vpop.f32.mrf.mxu0
  %v632 = vadd.f32 %v503, %v631
  %v633 = vpop.f32.mrf.mxu0
  %634 = vmatprep.mubr.f32.mxu0 0.0
  %635 = vmatmul.mubr.f32.gmra.mxu0 %v457
  %v636 = vpop.f32.mrf.mxu0
  %v637 = vadd.f32 %v503, %v636
  %v638 = vpop.f32.mrf.mxu0
  %639 = vmatprep.mubr.f32.mxu0 0.0
  %640 = vmatmul.mubr.f32.gmra.mxu0 %v458
  %v641 = vpop.f32.mrf.mxu0
  %v642 = vadd.f32 %v503, %v641
  %v643 = vpop.f32.mrf.mxu0
  %644 = vmatprep.mubr.f32.mxu0 0.0
  %645 = vmatmul.mubr.f32.gmra.mxu0 %v459
  %v646 = vpop.f32.mrf.mxu0
  %v647 = vadd.f32 %v503, %v646
  %v648 = vpop.f32.mrf.mxu0
  %649 = vmatprep.mubr.f32.mxu0 0.0
  %650 = vmatmul.mubr.f32.gmra.mxu0 %v460
  %v651 = vpop.f32.mrf.mxu0
  %v652 = vadd.f32 %v503, %v651
  %v653 = vpop.f32.mrf.mxu0
  %654 = vmatprep.mubr.f32.mxu0 0.0
  %655 = vmatmul.mubr.f32.gmra.mxu0 %v461
  %v656 = vpop.f32.mrf.mxu0
  %v657 = vadd.f32 %v503, %v656
  %v658 = vpop.f32.mrf.mxu0
  %659 = vmatprep.mubr.f32.mxu0 0.0
  %660 = vmatmul.mubr.f32.gmra.mxu0 %v462
  %v661 = vpop.f32.mrf.mxu0
  %v662 = vadd.f32 %v503, %v661
  %v663 = vpop.f32.mrf.mxu0
  %664 = vmatprep.mubr.f32.mxu0 0.0
  %665 = vmatmul.mubr.f32.gmra.mxu0 %v463
  %v666 = vpop.f32.mrf.mxu0
  %v667 = vadd.f32 %v503, %v666
  %v668 = vpop.f32.mrf.mxu0
  %669 = vmatprep.mubr.f32.mxu0 0.0
  %670 = vmatmul.mubr.f32.gmra.mxu0 %v464
  %v671 = vpop.f32.mrf.mxu0
  %v672 = vadd.f32 %v503, %v671
  %v673 = vpop.f32.mrf.mxu0
  %674 = vmatprep.mubr.f32.mxu0 0.0
  %675 = vmatmul.mubr.f32.gmra.mxu0 %v465
  %v676 = vpop.f32.mrf.mxu0
  %v677 = vadd.f32 %v503, %v676
  %v678 = vpop.f32.mrf.mxu0
  %679 = vmatprep.mubr.f32.mxu0 0.0
  %680 = vmatmul.mubr.f32.gmra.mxu0 %v466
  %v681 = vpop.f32.mrf.mxu0
  %v682 = vadd.f32 %v503, %v681
  %v683 = vpop.f32.mrf.mxu0
  %684 = vmatprep.mubr.f32.mxu0 0.0
  %685 = vmatmul.mubr.f32.gmra.mxu0 %v467
  %v686 = vpop.f32.mrf.mxu0
  %v687 = vadd.f32 %v503, %v686
  %v688 = vpop.f32.mrf.mxu0
  %689 = vmatprep.mubr.f32.mxu0 0.0
  %690 = vmatmul.mubr.f32.gmra.mxu0 %v468
  %v691 = vpop.f32.mrf.mxu0
  %v692 = vadd.f32 %v503, %v691
  %v693 = vpop.f32.mrf.mxu0
  %694 = vmatprep.mubr.f32.mxu0 0.0
  %695 = vmatmul.mubr.f32.gmra.mxu0 %v469
  %v696 = vpop.f32.mrf.mxu0
  %v697 = vadd.f32 %v503, %v696
  %v698 = vpop.f32.mrf.mxu0
  %699 = vmatprep.mubr.f32.mxu0 0.0
  %700 = vmatmul.mubr.f32.gmra.mxu0 %v470
  %v701 = vpop.f32.mrf.mxu0
  %v702 = vadd.f32 %v503, %v701
  %v703 = vpop.f32.mrf.mxu0
  %704 = vmatprep.mubr.f32.mxu0 0.0
  %705 = vmatmul.mubr.f32.gmra.mxu0 %v471
  %v706 = vpop.f32.mrf.mxu0
  %v707 = vadd.f32 %v503, %v706
  %v708 = vpop.f32.mrf.mxu0
  %709 = vmatprep.mubr.f32.mxu0 0.0
  %710 = vmatmul.mubr.f32.gmra.mxu0 %v472
  %v711 = vpop.f32.mrf.mxu0
  %v712 = vadd.f32 %v503, %v711
  %v713 = vpop.f32.mrf.mxu0
  %714 = vmatprep.mubr.f32.mxu0 0.0
  %715 = vmatmul.mubr.f32.gmra.mxu0 %v473
  %v716 = vpop.f32.mrf.mxu0
  %v717 = vadd.f32 %v503, %v716
  %v718 = vpop.f32.mrf.mxu0
  %719 = vmatprep.mubr.f32.mxu0 0.0
  %720 = vmatmul.mubr.f32.gmra.mxu0 %v474
  %v721 = vpop.f32.mrf.mxu0
  %v722 = vadd.f32 %v503, %v721
  %v723 = vpop.f32.mrf.mxu0
  %724 = vmatprep.mubr.f32.mxu0 0.0
  %725 = vmatmul.mubr.f32.gmra.mxu0 %v475
  %v726 = vpop.f32.mrf.mxu0
  %v727 = vadd.f32 %v503, %v726
  %v728 = vpop.f32.mrf.mxu0
  %729 = vmatprep.mubr.f32.mxu0 0.0
  %730 = vmatmul.mubr.f32.gmra.mxu0 %v476
  %v731 = vpop.f32.mrf.mxu0
  %v732 = vadd.f32 %v503, %v731
  %v733 = vpop.f32.mrf.mxu0
  %734 = vmatprep.mubr.f32.mxu0 0.0
  %735 = vmatmul.mubr.f32.gmra.mxu0 %v477
  %v736 = vpop.f32.mrf.mxu0
  %v737 = vadd.f32 %v503, %v736
  %v738 = vpop.f32.mrf.mxu0
  %739 = vmatprep.mubr.f32.mxu0 0.0
  %740 = vmatmul.mubr.f32.gmra.mxu0 %v478
  %v741 = vpop.f32.mrf.mxu0
  %v742 = vadd.f32 %v503, %v741
  %v743 = vpop.f32.mrf.mxu0
  %744 = vmatprep.mubr.f32.mxu0 0.0
  %745 = vmatmul.mubr.f32.gmra.mxu0 %v479
  %v746 = vpop.f32.mrf.mxu0
  %v747 = vadd.f32 %v503, %v746
  %v748 = vpop.f32.mrf.mxu0
  %749 = vmatprep.mubr.f32.mxu0 0.0
  %750 = vmatmul.mubr.f32.gmra.mxu0 %v480
  %v751 = vpop.f32.mrf.mxu0
  %v752 = vadd.f32 %v503, %v751
  %v753 = vpop.f32.mrf.mxu0
  %754 = vmatprep.mubr.f32.mxu0 0.0
  %755 = vmatmul.mubr.f32.gmra.mxu0 %v481
  %v756 = vpop.f32.mrf.mxu0
  %v757 = vadd.f32 %v503, %v756
  %v758 = vpop.f32.mrf.mxu0
  %759 = vdwg.mxu0
  %v760 = vlaneseq
  %v761 = vand.u32 %v760, 127
  %vm762 = vcmp.eq.s32.totalorder %v761, 0
  %763 = vset.pattern.permute.xlu0 0
  %764 = vperm.xlu0 %763, %v20
  %v765 = vpop.permute.xlu0 %764
  %767 = vset.pattern.permute.xlu0 0
  %768 = vperm.xlu0 %767, %v21
  %v769 = vpop.permute.xlu0 %768
  %771 = vset.pattern.permute.xlu0 0
  %772 = vperm.xlu0 %771, %v22
  %v773 = vpop.permute.xlu0 %772
  %775 = vset.pattern.permute.xlu0 0
  %776 = vperm.xlu0 %775, %v23
  %v777 = vpop.permute.xlu0 %776
  %779 = vset.pattern.permute.xlu0 0
  %780 = vperm.xlu0 %779, %v24
  %v781 = vpop.permute.xlu0 %780
  %783 = vset.pattern.permute.xlu0 0
  %784 = vperm.xlu0 %783, %v25
  %v785 = vpop.permute.xlu0 %784
  %787 = vset.pattern.permute.xlu0 0
  %788 = vperm.xlu0 %787, %v26
  %v789 = vpop.permute.xlu0 %788
  %791 = vset.pattern.permute.xlu0 0
  %792 = vperm.xlu0 %791, %v27
  %v793 = vpop.permute.xlu0 %792
  %795 = vset.pattern.permute.xlu0 0
  %796 = vperm.xlu0 %795, %v28
  %v797 = vpop.permute.xlu0 %796
  %799 = vset.pattern.permute.xlu0 0
  %800 = vperm.xlu0 %799, %v29
  %v801 = vpop.permute.xlu0 %800
  %803 = vset.pattern.permute.xlu0 0
  %804 = vperm.xlu0 %803, %v30
  %v805 = vpop.permute.xlu0 %804
  %807 = vset.pattern.permute.xlu0 0
  %808 = vperm.xlu0 %807, %v31
  %v809 = vpop.permute.xlu0 %808
  %811 = vset.pattern.permute.xlu0 0
  %812 = vperm.xlu0 %811, %v32
  %v813 = vpop.permute.xlu0 %812
  %815 = vset.pattern.permute.xlu0 0
  %816 = vperm.xlu0 %815, %v33
  %v817 = vpop.permute.xlu0 %816
  %819 = vset.pattern.permute.xlu0 0
  %820 = vperm.xlu0 %819, %v34
  %v821 = vpop.permute.xlu0 %820
  %823 = vset.pattern.permute.xlu0 0
  %824 = vperm.xlu0 %823, %v35
  %v825 = vpop.permute.xlu0 %824
  %827 = vset.pattern.permute.xlu0 0
  %828 = vperm.xlu0 %827, %v36
  %v829 = vpop.permute.xlu0 %828
  %831 = vset.pattern.permute.xlu0 0
  %832 = vperm.xlu0 %831, %v37
  %v833 = vpop.permute.xlu0 %832
  %835 = vset.pattern.permute.xlu0 0
  %836 = vperm.xlu0 %835, %v38
  %v837 = vpop.permute.xlu0 %836
  %839 = vset.pattern.permute.xlu0 0
  %840 = vperm.xlu0 %839, %v39
  %v841 = vpop.permute.xlu0 %840
  %843 = vset.pattern.permute.xlu0 0
  %844 = vperm.xlu0 %843, %v40
  %v845 = vpop.permute.xlu0 %844
  %847 = vset.pattern.permute.xlu0 0
  %848 = vperm.xlu0 %847, %v41
  %v849 = vpop.permute.xlu0 %848
  %851 = vset.pattern.permute.xlu0 0
  %852 = vperm.xlu0 %851, %v42
  %v853 = vpop.permute.xlu0 %852
  %855 = vset.pattern.permute.xlu0 0
  %856 = vperm.xlu0 %855, %v43
  %v857 = vpop.permute.xlu0 %856
  %859 = vset.pattern.permute.xlu0 0
  %860 = vperm.xlu0 %859, %v44
  %v861 = vpop.permute.xlu0 %860
  %863 = vset.pattern.permute.xlu0 0
  %864 = vperm.xlu0 %863, %v45
  %v865 = vpop.permute.xlu0 %864
  %867 = vset.pattern.permute.xlu0 0
  %868 = vperm.xlu0 %867, %v46
  %v869 = vpop.permute.xlu0 %868
  %871 = vset.pattern.permute.xlu0 0
  %872 = vperm.xlu0 %871, %v47
  %v873 = vpop.permute.xlu0 %872
  %875 = vset.pattern.permute.xlu0 0
  %876 = vperm.xlu0 %875, %v48
  %v877 = vpop.permute.xlu0 %876
  %879 = vset.pattern.permute.xlu0 0
  %880 = vperm.xlu0 %879, %v49
  %v881 = vpop.permute.xlu0 %880
  %883 = vset.pattern.permute.xlu0 0
  %884 = vperm.xlu0 %883, %v50
  %v885 = vpop.permute.xlu0 %884
  %887 = vset.pattern.permute.xlu0 0
  %888 = vperm.xlu0 %887, %v51
  %v889 = vpop.permute.xlu0 %888
  %891 = vset.pattern.permute.xlu0 0
  %892 = vperm.xlu0 %891, %v52
  %v893 = vpop.permute.xlu0 %892
  %895 = vset.pattern.permute.xlu0 0
  %896 = vperm.xlu0 %895, %v53
  %v897 = vpop.permute.xlu0 %896
  %899 = vset.pattern.permute.xlu0 0
  %900 = vperm.xlu0 %899, %v54
  %v901 = vpop.permute.xlu0 %900
  %903 = vset.pattern.permute.xlu0 0
  %904 = vperm.xlu0 %903, %v55
  %v905 = vpop.permute.xlu0 %904
  %907 = vset.pattern.permute.xlu0 0
  %908 = vperm.xlu0 %907, %v56
  %v909 = vpop.permute.xlu0 %908
  %911 = vset.pattern.permute.xlu0 0
  %912 = vperm.xlu0 %911, %v57
  %v913 = vpop.permute.xlu0 %912
  %v915 = vsel %vm762, %v765, %v572
  %v916 = vsel %vm762, %v769, %v577
  %v917 = vsel %vm762, %v773, %v582
  %v918 = vsel %vm762, %v777, %v587
  %v919 = vsel %vm762, %v781, %v592
  %v920 = vsel %vm762, %v785, %v597
  %v921 = vsel %vm762, %v789, %v602
  %v922 = vsel %vm762, %v793, %v607
  %v923 = vsel %vm762, %v797, %v612
  %v924 = vsel %vm762, %v801, %v617
  %v925 = vsel %vm762, %v805, %v622
  %v926 = vsel %vm762, %v809, %v627
  %v927 = vsel %vm762, %v813, %v632
  %v928 = vsel %vm762, %v817, %v637
  %v929 = vsel %vm762, %v821, %v642
  %v930 = vsel %vm762, %v825, %v647
  %v931 = vsel %vm762, %v829, %v652
  %v932 = vsel %vm762, %v833, %v657
  %v933 = vsel %vm762, %v837, %v662
  %v934 = vsel %vm762, %v841, %v667
  %v935 = vsel %vm762, %v845, %v672
  %v936 = vsel %vm762, %v849, %v677
  %v937 = vsel %vm762, %v853, %v682
  %v938 = vsel %vm762, %v857, %v687
  %v939 = vsel %vm762, %v861, %v692
  %v940 = vsel %vm762, %v865, %v697
  %v941 = vsel %vm762, %v869, %v702
  %v942 = vsel %vm762, %v873, %v707
  %v943 = vsel %vm762, %v877, %v712
  %v944 = vsel %vm762, %v881, %v717
  %v945 = vsel %vm762, %v885, %v722
  %v946 = vsel %vm762, %v889, %v727
  %v947 = vsel %vm762, %v893, %v732
  %v948 = vsel %vm762, %v897, %v737
  %v949 = vsel %vm762, %v901, %v742
  %v950 = vsel %vm762, %v905, %v747
  %v951 = vsel %vm762, %v909, %v752
  %v952 = vsel %vm762, %v913, %v757
  %vm953 = vcmp.eq.s32.totalorder %v761, 1
  %954 = vset.pattern.permute.xlu0 1
  %955 = vperm.xlu0 %954, %v20
  %v956 = vpop.permute.xlu0 %955
  %958 = vset.pattern.permute.xlu0 1
  %959 = vperm.xlu0 %958, %v21
  %v960 = vpop.permute.xlu0 %959
  %962 = vset.pattern.permute.xlu0 1
  %963 = vperm.xlu0 %962, %v22
  %v964 = vpop.permute.xlu0 %963
  %966 = vset.pattern.permute.xlu0 1
  %967 = vperm.xlu0 %966, %v23
  %v968 = vpop.permute.xlu0 %967
  %970 = vset.pattern.permute.xlu0 1
  %971 = vperm.xlu0 %970, %v24
  %v972 = vpop.permute.xlu0 %971
  %974 = vset.pattern.permute.xlu0 1
  %975 = vperm.xlu0 %974, %v25
  %v976 = vpop.permute.xlu0 %975
  %978 = vset.pattern.permute.xlu0 1
  %979 = vperm.xlu0 %978, %v26
  %v980 = vpop.permute.xlu0 %979
  %982 = vset.pattern.permute.xlu0 1
  %983 = vperm.xlu0 %982, %v27
  %v984 = vpop.permute.xlu0 %983
  %986 = vset.pattern.permute.xlu0 1
  %987 = vperm.xlu0 %986, %v28
  %v988 = vpop.permute.xlu0 %987
  %990 = vset.pattern.permute.xlu0 1
  %991 = vperm.xlu0 %990, %v29
  %v992 = vpop.permute.xlu0 %991
  %994 = vset.pattern.permute.xlu0 1
  %995 = vperm.xlu0 %994, %v30
  %v996 = vpop.permute.xlu0 %995
  %998 = vset.pattern.permute.xlu0 1
  %999 = vperm.xlu0 %998, %v31
  %v1000 = vpop.permute.xlu0 %999
  %1002 = vset.pattern.permute.xlu0 1
  %1003 = vperm.xlu0 %1002, %v32
  %v1004 = vpop.permute.xlu0 %1003
  %1006 = vset.pattern.permute.xlu0 1
  %1007 = vperm.xlu0 %1006, %v33
  %v1008 = vpop.permute.xlu0 %1007
  %1010 = vset.pattern.permute.xlu0 1
  %1011 = vperm.xlu0 %1010, %v34
  %v1012 = vpop.permute.xlu0 %1011
  %1014 = vset.pattern.permute.xlu0 1
  %1015 = vperm.xlu0 %1014, %v35
  %v1016 = vpop.permute.xlu0 %1015
  %1018 = vset.pattern.permute.xlu0 1
  %1019 = vperm.xlu0 %1018, %v36
  %v1020 = vpop.permute.xlu0 %1019
  %1022 = vset.pattern.permute.xlu0 1
  %1023 = vperm.xlu0 %1022, %v37
  %v1024 = vpop.permute.xlu0 %1023
  %1026 = vset.pattern.permute.xlu0 1
  %1027 = vperm.xlu0 %1026, %v38
  %v1028 = vpop.permute.xlu0 %1027
  %1030 = vset.pattern.permute.xlu0 1
  %1031 = vperm.xlu0 %1030, %v39
  %v1032 = vpop.permute.xlu0 %1031
  %1034 = vset.pattern.permute.xlu0 1
  %1035 = vperm.xlu0 %1034, %v40
  %v1036 = vpop.permute.xlu0 %1035
  %1038 = vset.pattern.permute.xlu0 1
  %1039 = vperm.xlu0 %1038, %v41
  %v1040 = vpop.permute.xlu0 %1039
  %1042 = vset.pattern.permute.xlu0 1
  %1043 = vperm.xlu0 %1042, %v42
  %v1044 = vpop.permute.xlu0 %1043
  %1046 = vset.pattern.permute.xlu0 1
  %1047 = vperm.xlu0 %1046, %v43
  %v1048 = vpop.permute.xlu0 %1047
  %1050 = vset.pattern.permute.xlu0 1
  %1051 = vperm.xlu0 %1050, %v44
  %v1052 = vpop.permute.xlu0 %1051
  %1054 = vset.pattern.permute.xlu0 1
  %1055 = vperm.xlu0 %1054, %v45
  %v1056 = vpop.permute.xlu0 %1055
  %1058 = vset.pattern.permute.xlu0 1
  %1059 = vperm.xlu0 %1058, %v46
  %v1060 = vpop.permute.xlu0 %1059
  %1062 = vset.pattern.permute.xlu0 1
  %1063 = vperm.xlu0 %1062, %v47
  %v1064 = vpop.permute.xlu0 %1063
  %1066 = vset.pattern.permute.xlu0 1
  %1067 = vperm.xlu0 %1066, %v48
  %v1068 = vpop.permute.xlu0 %1067
  %1070 = vset.pattern.permute.xlu0 1
  %1071 = vperm.xlu0 %1070, %v49
  %v1072 = vpop.permute.xlu0 %1071
  %1074 = vset.pattern.permute.xlu0 1
  %1075 = vperm.xlu0 %1074, %v50
  %v1076 = vpop.permute.xlu0 %1075
  %1078 = vset.pattern.permute.xlu0 1
  %1079 = vperm.xlu0 %1078, %v51
  %v1080 = vpop.permute.xlu0 %1079
  %1082 = vset.pattern.permute.xlu0 1
  %1083 = vperm.xlu0 %1082, %v52
  %v1084 = vpop.permute.xlu0 %1083
  %1086 = vset.pattern.permute.xlu0 1
  %1087 = vperm.xlu0 %1086, %v53
  %v1088 = vpop.permute.xlu0 %1087
  %1090 = vset.pattern.permute.xlu0 1
  %1091 = vperm.xlu0 %1090, %v54
  %v1092 = vpop.permute.xlu0 %1091
  %1094 = vset.pattern.permute.xlu0 1
  %1095 = vperm.xlu0 %1094, %v55
  %v1096 = vpop.permute.xlu0 %1095
  %1098 = vset.pattern.permute.xlu0 1
  %1099 = vperm.xlu0 %1098, %v56
  %v1100 = vpop.permute.xlu0 %1099
  %1102 = vset.pattern.permute.xlu0 1
  %1103 = vperm.xlu0 %1102, %v57
  %v1104 = vpop.permute.xlu0 %1103
  %v1106 = vsel %vm953, %v956, %v915
  %v1107 = vsel %vm953, %v960, %v916
  %v1108 = vsel %vm953, %v964, %v917
  %v1109 = vsel %vm953, %v968, %v918
  %v1110 = vsel %vm953, %v972, %v919
  %v1111 = vsel %vm953, %v976, %v920
  %v1112 = vsel %vm953, %v980, %v921
  %v1113 = vsel %vm953, %v984, %v922
  %v1114 = vsel %vm953, %v988, %v923
  %v1115 = vsel %vm953, %v992, %v924
  %v1116 = vsel %vm953, %v996, %v925
  %v1117 = vsel %vm953, %v1000, %v926
  %v1118 = vsel %vm953, %v1004, %v927
  %v1119 = vsel %vm953, %v1008, %v928
  %v1120 = vsel %vm953, %v1012, %v929
  %v1121 = vsel %vm953, %v1016, %v930
  %v1122 = vsel %vm953, %v1020, %v931
  %v1123 = vsel %vm953, %v1024, %v932
  %v1124 = vsel %vm953, %v1028, %v933
  %v1125 = vsel %vm953, %v1032, %v934
  %v1126 = vsel %vm953, %v1036, %v935
  %v1127 = vsel %vm953, %v1040, %v936
  %v1128 = vsel %vm953, %v1044, %v937
  %v1129 = vsel %vm953, %v1048, %v938
  %v1130 = vsel %vm953, %v1052, %v939
  %v1131 = vsel %vm953, %v1056, %v940
  %v1132 = vsel %vm953, %v1060, %v941
  %v1133 = vsel %vm953, %v1064, %v942
  %v1134 = vsel %vm953, %v1068, %v943
  %v1135 = vsel %vm953, %v1072, %v944
  %v1136 = vsel %vm953, %v1076, %v945
  %v1137 = vsel %vm953, %v1080, %v946
  %v1138 = vsel %vm953, %v1084, %v947
  %v1139 = vsel %vm953, %v1088, %v948
  %v1140 = vsel %vm953, %v1092, %v949
  %v1141 = vsel %vm953, %v1096, %v950
  %v1142 = vsel %vm953, %v1100, %v951
  %v1143 = vsel %vm953, %v1104, %v952
  %1144 = vst [vmem:[%s5] sm:$0xff] %v1106
  %1145 = vst [vmem:[%s5 + $0x8] sm:$0xff] %v1107
  %1146 = vst [vmem:[%s5 + $0x10] sm:$0xff] %v1108
  %1147 = vst [vmem:[%s5 + $0x18] sm:$0xff] %v1109
  %1148 = vst [vmem:[%s5 + $0x20] sm:$0xff] %v1110
  %1149 = vst [vmem:[%s5 + $0x28] sm:$0xff] %v1111
  %1150 = vst [vmem:[%s5 + $0x30] sm:$0xff] %v1112
  %1151 = vst [vmem:[%s5 + $0x38] sm:$0xff] %v1113
  %1152 = vst [vmem:[%s5 + $0x40] sm:$0xff] %v1114
  %1153 = vst [vmem:[%s5 + $0x48] sm:$0xff] %v1115
  %1154 = vst [vmem:[%s5 + $0x50] sm:$0xff] %v1116
  %1155 = vst [vmem:[%s5 + $0x58] sm:$0xff] %v1117
  %1156 = vst [vmem:[%s5 + $0x60] sm:$0xff] %v1118
  %1157 = vst [vmem:[%s5 + $0x68] sm:$0xff] %v1119
  %1158 = vst [vmem:[%s5 + $0x70] sm:$0xff] %v1120
  %1159 = vst [vmem:[%s5 + $0x78] sm:$0xff] %v1121
  %1160 = vst [vmem:[%s5 + $0x80] sm:$0xff] %v1122
  %1161 = vst [vmem:[%s5 + $0x88] sm:$0xff] %v1123
  %1162 = vst [vmem:[%s5 + $0x90] sm:$0xff] %v1124
  %1163 = vst [vmem:[%s5 + $0x98] sm:$0xff] %v1125
  %1164 = vst [vmem:[%s5 + $0xa0] sm:$0xff] %v1126
  %1165 = vst [vmem:[%s5 + $0xa8] sm:$0xff] %v1127
  %1166 = vst [vmem:[%s5 + $0xb0] sm:$0xff] %v1128
  %1167 = vst [vmem:[%s5 + $0xb8] sm:$0xff] %v1129
  %1168 = vst [vmem:[%s5 + $0xc0] sm:$0xff] %v1130
  %1169 = vst [vmem:[%s5 + $0xc8] sm:$0xff] %v1131
  %1170 = vst [vmem:[%s5 + $0xd0] sm:$0xff] %v1132
  %1171 = vst [vmem:[%s5 + $0xd8] sm:$0xff] %v1133
  %1172 = vst [vmem:[%s5 + $0xe0] sm:$0xff] %v1134
  %1173 = vst [vmem:[%s5 + $0xe8] sm:$0xff] %v1135
  %1174 = vst [vmem:[%s5 + $0xf0] sm:$0xff] %v1136
  %1175 = vst [vmem:[%s5 + $0xf8] sm:$0xff] %v1137
  %1176 = vst [vmem:[%s5 + $0x100] sm:$0xff] %v1138
  %1177 = vst [vmem:[%s5 + $0x108] sm:$0xff] %v1139
  %1178 = vst [vmem:[%s5 + $0x110] sm:$0xff] %v1140
  %1179 = vst [vmem:[%s5 + $0x118] sm:$0xff] %v1141
  %1180 = vst [vmem:[%s5 + $0x120] sm:$0xff] %v1142
  %1181 = vst [vmem:[%s5 + $0x128] sm:$0xff] %v1143
  // Predicated region
  $region22: #{forward.1} parent=0 // pred_check
    _
  $region23: #{forward.1} parent=0 // pred_check_branch
    %1183 = sbr.rel (0) target = $region25
  $region24: #{forward.1} parent=0 // pred_region
    _
  $region25: #{forward.1} parent=0 // pred_fallthru
    _
  // Predicated region
  $region26: #{forward.1} parent=0 // pred_check
    _
  $region27: #{forward.1} parent=0 // pred_check_branch
    %1185 = sbr.rel (0) target = $region29
  $region28: #{forward.1} parent=0 // pred_region
    _
  $region29: #{forward.1} parent=0 // pred_fallthru
    _

</llo_original>
